<compile_context>
chip_gen: v5e
topology: v5e:2x2
jax: 0.10.0
libtpu: 0.0.40
codegen_flags: <defaults>
</compile_context>

<pallas_src>
import jax
import jax.numpy as jnp
from jax import lax
from jax.experimental import pallas as pl
from jax.experimental.pallas import tpu as pltpu

# ----------------------------- config (small) --------------------------------
BATCH, SEQ = 2, 8
HIDDEN, HEADS, HEAD_DIM = 64, 2, 32
VOCAB, MLP = 128, 128
LORA_R, LORA_ALPHA = 64, 16                 # as in the PyTorch module
LORA_SCALING = LORA_ALPHA / LORA_R          # = 0.25
BS = BATCH * SEQ
N_VALID = BATCH * (SEQ - 1)                 # tokens contributing to the loss


# ------------------------------- fused kernel --------------------------------
def _fused_forward_kernel(h_ref, labels_ref, ln1_ref, ln2_ref, lnf_ref,
                          wqkv_ref, wo_ref, wgu_ref, wd_ref, lm_head_ref,
                          loss_ref):
    f32 = jnp.float32
    bf16 = jnp.bfloat16

    def rms(x, w_ref):
        # f32 statistics (v5e has no bf16 VPU/EUP path)
        var = jnp.mean(x * x, axis=-1, keepdims=True)
        return x * lax.rsqrt(var + 1e-6) * w_ref[...]

    h = h_ref[...].astype(f32)                               # (BS, D) residual in f32

    # --------------------------- attention block -----------------------------
    x1 = rms(h, ln1_ref).astype(bf16)                        # bf16 into MXU
    qkv = jnp.dot(x1, wqkv_ref[...], preferred_element_type=f32)   # (BS, 3D) f32
    qkv3 = qkv.reshape(BATCH, SEQ, 3 * HIDDEN).astype(bf16)  # leading-dim split only

    scale = f32(1.0 / (HEAD_DIM ** 0.5))
    row = lax.broadcasted_iota(jnp.int32, (BATCH, SEQ, SEQ), 1)
    col = lax.broadcasted_iota(jnp.int32, (BATCH, SEQ, SEQ), 2)
    causal = col <= row

    head_outs = []
    for hh in range(HEADS):                                  # 2 iterations, batched over BATCH
        cq = hh * HEAD_DIM
        q = qkv3[:, :, cq:cq + HEAD_DIM]                     # (B, S, HD) bf16
        k = qkv3[:, :, HIDDEN + cq:HIDDEN + cq + HEAD_DIM]
        v = qkv3[:, :, 2 * HIDDEN + cq:2 * HIDDEN + cq + HEAD_DIM]
        s = jnp.einsum('bqd,bkd->bqk', q, k,
                       preferred_element_type=f32) * scale   # (B, S, S) f32
        s = jnp.where(causal, s, f32(-1e30))
        m = jnp.max(s, axis=-1, keepdims=True)               # f32 softmax stats
        p = jnp.exp(s - m)
        p = p * pl.reciprocal(jnp.sum(p, axis=-1, keepdims=True), approx=True)
        head_outs.append(
            jnp.einsum('bqk,bkd->bqd', p.astype(bf16), v,
                       preferred_element_type=f32))          # (B, S, HD) f32
    o = jnp.concatenate(head_outs, axis=-1).reshape(BS, HIDDEN)   # lane-dense value
    o = jnp.dot(o.astype(bf16), wo_ref[...], preferred_element_type=f32)
    h = h + o

    # ------------------------------ MLP block --------------------------------
    x2 = rms(h, ln2_ref).astype(bf16)
    gu = jnp.dot(x2, wgu_ref[...], preferred_element_type=f32)     # (BS, 2*MLP)
    gate = gu[:, :MLP]                                       # 128-lane aligned slices
    up = gu[:, MLP:]
    sig = pl.reciprocal(1.0 + jnp.exp(-gate), approx=True)   # sigmoid on EUP
    act = (gate * sig * up).astype(bf16)                     # silu(gate) * up
    h = h + jnp.dot(act, wd_ref[...], preferred_element_type=f32)

    # ----------------- lm_head + shifted cross-entropy loss ------------------
    hf = rms(h, lnf_ref).astype(bf16)
    logits = jnp.dot(hf, lm_head_ref[...], preferred_element_type=f32)  # (BS, V)
    labels = labels_ref[...]                       # (BS, 1) int32, -1 = ignore
    m = jnp.max(logits, axis=-1, keepdims=True)
    lse = jnp.log(jnp.sum(jnp.exp(logits - m), axis=-1, keepdims=True)) + m
    vcol = lax.broadcasted_iota(jnp.int32, logits.shape, 1)
    picked = jnp.sum(jnp.where(vcol == labels, logits, 0.0),
                     axis=-1, keepdims=True)
    nll = jnp.where(labels >= 0, lse - picked, 0.0)
    loss_ref[0, 0] = jnp.sum(nll) * f32(1.0 / N_VALID)       # scalar -> SMEM


# ------------------------------ parameters ------------------------------------
def init_params(key):
    ks = jax.random.split(key, 12)
    n = lambda k, shape, s=0.02: (jax.random.normal(k, shape, jnp.float32) * s)
    bf = jnp.bfloat16
    return {
        "embed": n(ks[0], (VOCAB, HIDDEN)),
        "ln1": jnp.ones((HIDDEN,), jnp.float32),
        "ln2": jnp.ones((HIDDEN,), jnp.float32),
        "lnf": jnp.ones((HIDDEN,), jnp.float32),
        # base (4-bit in the original, here dequantized bf16 compute dtype)
        "wq": n(ks[1], (HIDDEN, HIDDEN)).astype(bf),
        "wk": n(ks[2], (HIDDEN, HIDDEN)).astype(bf),
        "wv": n(ks[3], (HIDDEN, HIDDEN)).astype(bf),
        "wo": n(ks[4], (HIDDEN, HIDDEN)).astype(bf),
        "wg": n(ks[5], (HIDDEN, MLP)).astype(bf),
        "wu": n(ks[6], (HIDDEN, MLP)).astype(bf),
        "wd": n(ks[7], (MLP, HIDDEN)).astype(bf),
        "lm_head": n(ks[8], (HIDDEN, VOCAB)).astype(bf),
        # LoRA adapters (peft default: A random, B = 0)
        "aq": n(ks[9], (HIDDEN, LORA_R)),
        "bq": jnp.zeros((LORA_R, HIDDEN), jnp.float32),
        "av": n(ks[10], (HIDDEN, LORA_R)),
        "bv": jnp.zeros((LORA_R, HIDDEN), jnp.float32),
    }


def fuse_params(p):
    """One-time parameter prep: fold LoRA into qkv, fuse qkv / gate-up."""
    bf = jnp.bfloat16
    f32 = jnp.float32
    # Eval/identity-dropout semantics: W_eff = W + scaling * A @ B  (f32 math,
    # exact at init since B == 0); cast to the bf16 compute dtype afterwards.
    dq = LORA_SCALING * (p["aq"] @ p["bq"])
    dv = LORA_SCALING * (p["av"] @ p["bv"])
    wqkv = jnp.concatenate([p["wq"].astype(f32) + dq,
                            p["wk"].astype(f32),
                            p["wv"].astype(f32) + dv], axis=1).astype(bf)   # (D, 3D)
    wgu = jnp.concatenate([p["wg"], p["wu"]], axis=1).astype(bf)            # (D, 2*MLP)
    return {
        "embed": p["embed"],
        "ln1": p["ln1"].reshape(1, HIDDEN),
        "ln2": p["ln2"].reshape(1, HIDDEN),
        "lnf": p["lnf"].reshape(1, HIDDEN),
        "wqkv": wqkv,
        "wo": p["wo"].astype(bf),
        "wgu": wgu, "wd": p["wd"].astype(bf),
        "lm_head": p["lm_head"].astype(bf),
    }


# ------------------------------ forward (loss) ---------------------------------
def forward_loss(fused, tokens):
    B, S = tokens.shape
    # embedding gather stays in JAX; everything else runs in one fused kernel.
    # Activations enter the kernel as bf16 (halves HBM->VMEM traffic).
    h = jnp.take(fused["embed"], tokens, axis=0).reshape(B * S, HIDDEN)
    h = h.astype(jnp.bfloat16)
    # shifted labels, -1 marks the (ignored) last position of each sequence
    ignore = jnp.full((B, 1), -1, jnp.int32)
    labels = jnp.concatenate([tokens[:, 1:].astype(jnp.int32), ignore],
                             axis=1).reshape(B * S, 1)

    vmem = pl.BlockSpec(memory_space=pltpu.MemorySpace.VMEM)
    loss = pl.pallas_call(
        _fused_forward_kernel,
        out_shape=jax.ShapeDtypeStruct((1, 1), jnp.float32),
        in_specs=[vmem] * 10,
        out_specs=pl.BlockSpec(memory_space=pltpu.MemorySpace.SMEM),
    )(h, labels,
      fused["ln1"], fused["ln2"], fused["lnf"],
      fused["wqkv"], fused["wo"],
      fused["wgu"], fused["wd"], fused["lm_head"])
    return loss[0, 0]


# -------------------------------- main ----------------------------------------
if __name__ == "__main__":
    key = jax.random.PRNGKey(0)
    pkey, tkey = jax.random.split(key)
    params = init_params(pkey)
    fused = fuse_params(params)
    tokens = jax.random.randint(tkey, (BATCH, SEQ), 0, VOCAB, dtype=jnp.int32)

    loss = jax.jit(forward_loss)(fused, tokens)
    jax.block_until_ready(loss)
    assert loss.shape == () and bool(jnp.isfinite(loss))
    print("KERNEL_OK")
</pallas_src>

<mosaic_0001>
module attributes {stable_mosaic.version = 11 : i64} {
  func.func @_fused_forward_kernel(%arg0: memref<16x64xbf16, #tpu.memory_space<vmem>>, %arg1: memref<16x1xi32, #tpu.memory_space<vmem>>, %arg2: memref<1x64xf32, #tpu.memory_space<vmem>>, %arg3: memref<1x64xf32, #tpu.memory_space<vmem>>, %arg4: memref<1x64xf32, #tpu.memory_space<vmem>>, %arg5: memref<64x192xbf16, #tpu.memory_space<vmem>>, %arg6: memref<64x64xbf16, #tpu.memory_space<vmem>>, %arg7: memref<64x256xbf16, #tpu.memory_space<vmem>>, %arg8: memref<128x64xbf16, #tpu.memory_space<vmem>>, %arg9: memref<64x128xbf16, #tpu.memory_space<vmem>>, %arg10: memref<1x1xf32, #tpu.memory_space<smem>>) attributes {dimension_semantics = [], scalar_prefetch = 0 : i64, scratch_operands = 0 : i64, tpu.core_type = #tpu.core_type<tc>} {
    %c0 = arith.constant 0 : index
    %c0_0 = arith.constant 0 : index
    %0 = vector.load %arg0[%c0, %c0_0] : memref<16x64xbf16, #tpu.memory_space<vmem>>, vector<16x64xbf16>
    %1 = arith.extf %0 : vector<16x64xbf16> to vector<16x64xf32>
    %2 = arith.mulf %1, %1 : vector<16x64xf32>
    %cst = arith.constant dense<0.000000e+00> : vector<16xf32>
    %3 = vector.multi_reduction <add>, %2, %cst [1] : vector<16x64xf32> to vector<16xf32>
    %4 = vector.shape_cast %3 : vector<16xf32> to vector<16x1xf32>
    %cst_1 = arith.constant 6.400000e+01 : f32
    %5 = vector.broadcast %cst_1 : f32 to vector<16x1xf32>
    %6 = arith.divf %4, %5 : vector<16x1xf32>
    %cst_2 = arith.constant 9.99999997E-7 : f32
    %7 = vector.broadcast %cst_2 : f32 to vector<16x1xf32>
    %8 = arith.addf %6, %7 : vector<16x1xf32>
    %9 = math.rsqrt %8 : vector<16x1xf32>
    %10 = vector.broadcast %9 : vector<16x1xf32> to vector<16x64xf32>
    %11 = arith.mulf %1, %10 : vector<16x64xf32>
    %c0_3 = arith.constant 0 : index
    %c0_4 = arith.constant 0 : index
    %12 = vector.load %arg2[%c0_3, %c0_4] : memref<1x64xf32, #tpu.memory_space<vmem>>, vector<1x64xf32>
    %13 = vector.broadcast %12 : vector<1x64xf32> to vector<16x64xf32>
    %14 = arith.mulf %11, %13 : vector<16x64xf32>
    %15 = arith.truncf %14 : vector<16x64xf32> to vector<16x64xbf16>
    %c0_5 = arith.constant 0 : index
    %c0_6 = arith.constant 0 : index
    %16 = vector.load %arg5[%c0_5, %c0_6] : memref<64x192xbf16, #tpu.memory_space<vmem>>, vector<64x192xbf16>
    %cst_7 = arith.constant dense<0.000000e+00> : vector<16x192xf32>
    %17 = tpu.matmul %15, %16, %cst_7 {dimension_numbers = #tpu.dot_dimension_numbers<[1], [0], [0], [1], [0, 0, 1, 1], [], []>} : vector<16x64xbf16>, vector<64x192xbf16>, vector<16x192xf32> -> vector<16x192xf32>
    %18 = vector.shape_cast %17 : vector<16x192xf32> to vector<2x8x192xf32>
    %19 = arith.truncf %18 : vector<2x8x192xf32> to vector<2x8x192xbf16>
    %20 = tpu.iota {dimensions = array<i32: 1>} : vector<2x8x8xi32>
    %21 = tpu.iota {dimensions = array<i32: 2>} : vector<2x8x8xi32>
    %22 = arith.cmpi sle, %21, %20 : vector<2x8x8xi32>
    %23 = vector.extract_strided_slice %19 {offsets = [0, 0, 0], sizes = [2, 8, 32], strides = [1, 1, 1]} : vector<2x8x192xbf16> to vector<2x8x32xbf16>
    %24 = vector.extract_strided_slice %19 {offsets = [0, 0, 64], sizes = [2, 8, 32], strides = [1, 1, 1]} : vector<2x8x192xbf16> to vector<2x8x32xbf16>
    %25 = vector.extract_strided_slice %19 {offsets = [0, 0, 128], sizes = [2, 8, 32], strides = [1, 1, 1]} : vector<2x8x192xbf16> to vector<2x8x32xbf16>
    "tpu.trace_start"() <{level = 10 : i32, message = "bqd,bkd->bqk"}> : () -> ()
    %cst_8 = arith.constant dense<0.000000e+00> : vector<2x8x8xf32>
    %26 = tpu.matmul %23, %24, %cst_8 {dimension_numbers = #tpu.dot_dimension_numbers<[2], [2], [1], [1], [0, 0, 0, 1, 1, 1], [0], [0]>} : vector<2x8x32xbf16>, vector<2x8x32xbf16>, vector<2x8x8xf32> -> vector<2x8x8xf32>
    "tpu.trace_stop"() : () -> ()
    %cst_9 = arith.constant 0.176776692 : f32
    %27 = vector.broadcast %cst_9 : f32 to vector<2x8x8xf32>
    %28 = arith.mulf %26, %27 : vector<2x8x8xf32>
    %cst_10 = arith.constant -1.000000e+30 : f32
    %29 = vector.broadcast %cst_10 : f32 to vector<2x8x8xf32>
    %30 = arith.select %22, %28, %29 : vector<2x8x8xi1>, vector<2x8x8xf32>
    %cst_11 = arith.constant dense<0xFF800000> : vector<2x8xf32>
    %31 = vector.multi_reduction <maximumf>, %30, %cst_11 [2] : vector<2x8x8xf32> to vector<2x8xf32>
    %32 = vector.shape_cast %31 : vector<2x8xf32> to vector<2x8x1xf32>
    %33 = vector.broadcast %32 : vector<2x8x1xf32> to vector<2x8x8xf32>
    %34 = arith.subf %30, %33 : vector<2x8x8xf32>
    %35 = math.exp %34 : vector<2x8x8xf32>
    %cst_12 = arith.constant dense<0.000000e+00> : vector<2x8xf32>
    %36 = vector.multi_reduction <add>, %35, %cst_12 [2] : vector<2x8x8xf32> to vector<2x8xf32>
    %37 = vector.shape_cast %36 : vector<2x8xf32> to vector<2x8x1xf32>
    %38 = tpu.reciprocal %37 {approx = true} : vector<2x8x1xf32> -> vector<2x8x1xf32>
    %39 = vector.broadcast %38 : vector<2x8x1xf32> to vector<2x8x8xf32>
    %40 = arith.mulf %35, %39 : vector<2x8x8xf32>
    %41 = arith.truncf %40 : vector<2x8x8xf32> to vector<2x8x8xbf16>
    "tpu.trace_start"() <{level = 10 : i32, message = "bqk,bkd->bqd"}> : () -> ()
    %cst_13 = arith.constant dense<0.000000e+00> : vector<2x8x32xf32>
    %42 = tpu.matmul %41, %25, %cst_13 {dimension_numbers = #tpu.dot_dimension_numbers<[2], [1], [1], [2], [0, 0, 0, 1, 1, 2], [0], [0]>} : vector<2x8x8xbf16>, vector<2x8x32xbf16>, vector<2x8x32xf32> -> vector<2x8x32xf32>
    "tpu.trace_stop"() : () -> ()
    %43 = vector.extract_strided_slice %19 {offsets = [0, 0, 32], sizes = [2, 8, 32], strides = [1, 1, 1]} : vector<2x8x192xbf16> to vector<2x8x32xbf16>
    %44 = vector.extract_strided_slice %19 {offsets = [0, 0, 96], sizes = [2, 8, 32], strides = [1, 1, 1]} : vector<2x8x192xbf16> to vector<2x8x32xbf16>
    %45 = vector.extract_strided_slice %19 {offsets = [0, 0, 160], sizes = [2, 8, 32], strides = [1, 1, 1]} : vector<2x8x192xbf16> to vector<2x8x32xbf16>
    "tpu.trace_start"() <{level = 10 : i32, message = "bqd,bkd->bqk"}> : () -> ()
    %cst_14 = arith.constant dense<0.000000e+00> : vector<2x8x8xf32>
    %46 = tpu.matmul %43, %44, %cst_14 {dimension_numbers = #tpu.dot_dimension_numbers<[2], [2], [1], [1], [0, 0, 0, 1, 1, 1], [0], [0]>} : vector<2x8x32xbf16>, vector<2x8x32xbf16>, vector<2x8x8xf32> -> vector<2x8x8xf32>
    "tpu.trace_stop"() : () -> ()
    %cst_15 = arith.constant 0.176776692 : f32
    %47 = vector.broadcast %cst_15 : f32 to vector<2x8x8xf32>
    %48 = arith.mulf %46, %47 : vector<2x8x8xf32>
    %cst_16 = arith.constant -1.000000e+30 : f32
    %49 = vector.broadcast %cst_16 : f32 to vector<2x8x8xf32>
    %50 = arith.select %22, %48, %49 : vector<2x8x8xi1>, vector<2x8x8xf32>
    %cst_17 = arith.constant dense<0xFF800000> : vector<2x8xf32>
    %51 = vector.multi_reduction <maximumf>, %50, %cst_17 [2] : vector<2x8x8xf32> to vector<2x8xf32>
    %52 = vector.shape_cast %51 : vector<2x8xf32> to vector<2x8x1xf32>
    %53 = vector.broadcast %52 : vector<2x8x1xf32> to vector<2x8x8xf32>
    %54 = arith.subf %50, %53 : vector<2x8x8xf32>
    %55 = math.exp %54 : vector<2x8x8xf32>
    %cst_18 = arith.constant dense<0.000000e+00> : vector<2x8xf32>
    %56 = vector.multi_reduction <add>, %55, %cst_18 [2] : vector<2x8x8xf32> to vector<2x8xf32>
    %57 = vector.shape_cast %56 : vector<2x8xf32> to vector<2x8x1xf32>
    %58 = tpu.reciprocal %57 {approx = true} : vector<2x8x1xf32> -> vector<2x8x1xf32>
    %59 = vector.broadcast %58 : vector<2x8x1xf32> to vector<2x8x8xf32>
    %60 = arith.mulf %55, %59 : vector<2x8x8xf32>
    %61 = arith.truncf %60 : vector<2x8x8xf32> to vector<2x8x8xbf16>
    "tpu.trace_start"() <{level = 10 : i32, message = "bqk,bkd->bqd"}> : () -> ()
    %cst_19 = arith.constant dense<0.000000e+00> : vector<2x8x32xf32>
    %62 = tpu.matmul %61, %45, %cst_19 {dimension_numbers = #tpu.dot_dimension_numbers<[2], [1], [1], [2], [0, 0, 0, 1, 1, 2], [0], [0]>} : vector<2x8x8xbf16>, vector<2x8x32xbf16>, vector<2x8x32xf32> -> vector<2x8x32xf32>
    "tpu.trace_stop"() : () -> ()
    %63 = tpu.concatenate %42, %62 in 2 : vector<2x8x32xf32>, vector<2x8x32xf32> -> vector<2x8x64xf32>
    %64 = vector.shape_cast %63 : vector<2x8x64xf32> to vector<16x64xf32>
    %65 = arith.truncf %64 : vector<16x64xf32> to vector<16x64xbf16>
    %c0_20 = arith.constant 0 : index
    %c0_21 = arith.constant 0 : index
    %66 = vector.load %arg6[%c0_20, %c0_21] : memref<64x64xbf16, #tpu.memory_space<vmem>>, vector<64x64xbf16>
    %cst_22 = arith.constant dense<0.000000e+00> : vector<16x64xf32>
    %67 = tpu.matmul %65, %66, %cst_22 {dimension_numbers = #tpu.dot_dimension_numbers<[1], [0], [0], [1], [0, 0, 1, 1], [], []>} : vector<16x64xbf16>, vector<64x64xbf16>, vector<16x64xf32> -> vector<16x64xf32>
    %68 = arith.addf %1, %67 : vector<16x64xf32>
    %69 = arith.mulf %68, %68 : vector<16x64xf32>
    %cst_23 = arith.constant dense<0.000000e+00> : vector<16xf32>
    %70 = vector.multi_reduction <add>, %69, %cst_23 [1] : vector<16x64xf32> to vector<16xf32>
    %71 = vector.shape_cast %70 : vector<16xf32> to vector<16x1xf32>
    %cst_24 = arith.constant 6.400000e+01 : f32
    %72 = vector.broadcast %cst_24 : f32 to vector<16x1xf32>
    %73 = arith.divf %71, %72 : vector<16x1xf32>
    %cst_25 = arith.constant 9.99999997E-7 : f32
    %74 = vector.broadcast %cst_25 : f32 to vector<16x1xf32>
    %75 = arith.addf %73, %74 : vector<16x1xf32>
    %76 = math.rsqrt %75 : vector<16x1xf32>
    %77 = vector.broadcast %76 : vector<16x1xf32> to vector<16x64xf32>
    %78 = arith.mulf %68, %77 : vector<16x64xf32>
    %c0_26 = arith.constant 0 : index
    %c0_27 = arith.constant 0 : index
    %79 = vector.load %arg3[%c0_26, %c0_27] : memref<1x64xf32, #tpu.memory_space<vmem>>, vector<1x64xf32>
    %80 = vector.broadcast %79 : vector<1x64xf32> to vector<16x64xf32>
    %81 = arith.mulf %78, %80 : vector<16x64xf32>
    %82 = arith.truncf %81 : vector<16x64xf32> to vector<16x64xbf16>
    %c0_28 = arith.constant 0 : index
    %c0_29 = arith.constant 0 : index
    %83 = vector.load %arg7[%c0_28, %c0_29] : memref<64x256xbf16, #tpu.memory_space<vmem>>, vector<64x256xbf16>
    %cst_30 = arith.constant dense<0.000000e+00> : vector<16x256xf32>
    %84 = tpu.matmul %82, %83, %cst_30 {dimension_numbers = #tpu.dot_dimension_numbers<[1], [0], [0], [1], [0, 0, 1, 1], [], []>} : vector<16x64xbf16>, vector<64x256xbf16>, vector<16x256xf32> -> vector<16x256xf32>
    %85 = vector.extract_strided_slice %84 {offsets = [0, 0], sizes = [16, 128], strides = [1, 1]} : vector<16x256xf32> to vector<16x128xf32>
    %86 = vector.extract_strided_slice %84 {offsets = [0, 128], sizes = [16, 128], strides = [1, 1]} : vector<16x256xf32> to vector<16x128xf32>
    %cst_31 = arith.constant 0.000000e+00 : f32
    %87 = vector.broadcast %cst_31 : f32 to vector<16x128xf32>
    %88 = arith.subf %87, %85 : vector<16x128xf32>
    %89 = math.exp %88 : vector<16x128xf32>
    %cst_32 = arith.constant 1.000000e+00 : f32
    %90 = vector.broadcast %cst_32 : f32 to vector<16x128xf32>
    %91 = arith.addf %90, %89 : vector<16x128xf32>
    %92 = tpu.reciprocal %91 {approx = true} : vector<16x128xf32> -> vector<16x128xf32>
    %93 = arith.mulf %85, %92 : vector<16x128xf32>
    %94 = arith.mulf %93, %86 : vector<16x128xf32>
    %95 = arith.truncf %94 : vector<16x128xf32> to vector<16x128xbf16>
    %c0_33 = arith.constant 0 : index
    %c0_34 = arith.constant 0 : index
    %96 = vector.load %arg8[%c0_33, %c0_34] : memref<128x64xbf16, #tpu.memory_space<vmem>>, vector<128x64xbf16>
    %cst_35 = arith.constant dense<0.000000e+00> : vector<16x64xf32>
    %97 = tpu.matmul %95, %96, %cst_35 {dimension_numbers = #tpu.dot_dimension_numbers<[1], [0], [0], [1], [0, 0, 1, 1], [], []>} : vector<16x128xbf16>, vector<128x64xbf16>, vector<16x64xf32> -> vector<16x64xf32>
    %98 = arith.addf %68, %97 : vector<16x64xf32>
    %99 = arith.mulf %98, %98 : vector<16x64xf32>
    %cst_36 = arith.constant dense<0.000000e+00> : vector<16xf32>
    %100 = vector.multi_reduction <add>, %99, %cst_36 [1] : vector<16x64xf32> to vector<16xf32>
    %101 = vector.shape_cast %100 : vector<16xf32> to vector<16x1xf32>
    %cst_37 = arith.constant 6.400000e+01 : f32
    %102 = vector.broadcast %cst_37 : f32 to vector<16x1xf32>
    %103 = arith.divf %101, %102 : vector<16x1xf32>
    %cst_38 = arith.constant 9.99999997E-7 : f32
    %104 = vector.broadcast %cst_38 : f32 to vector<16x1xf32>
    %105 = arith.addf %103, %104 : vector<16x1xf32>
    %106 = math.rsqrt %105 : vector<16x1xf32>
    %107 = vector.broadcast %106 : vector<16x1xf32> to vector<16x64xf32>
    %108 = arith.mulf %98, %107 : vector<16x64xf32>
    %c0_39 = arith.constant 0 : index
    %c0_40 = arith.constant 0 : index
    %109 = vector.load %arg4[%c0_39, %c0_40] : memref<1x64xf32, #tpu.memory_space<vmem>>, vector<1x64xf32>
    %110 = vector.broadcast %109 : vector<1x64xf32> to vector<16x64xf32>
    %111 = arith.mulf %108, %110 : vector<16x64xf32>
    %112 = arith.truncf %111 : vector<16x64xf32> to vector<16x64xbf16>
    %c0_41 = arith.constant 0 : index
    %c0_42 = arith.constant 0 : index
    %113 = vector.load %arg9[%c0_41, %c0_42] : memref<64x128xbf16, #tpu.memory_space<vmem>>, vector<64x128xbf16>
    %cst_43 = arith.constant dense<0.000000e+00> : vector<16x128xf32>
    %114 = tpu.matmul %112, %113, %cst_43 {dimension_numbers = #tpu.dot_dimension_numbers<[1], [0], [0], [1], [0, 0, 1, 1], [], []>} : vector<16x64xbf16>, vector<64x128xbf16>, vector<16x128xf32> -> vector<16x128xf32>
    %c0_44 = arith.constant 0 : index
    %c0_45 = arith.constant 0 : index
    %115 = vector.load %arg1[%c0_44, %c0_45] : memref<16x1xi32, #tpu.memory_space<vmem>>, vector<16x1xi32>
    %cst_46 = arith.constant dense<0xFF800000> : vector<16xf32>
    %116 = vector.multi_reduction <maximumf>, %114, %cst_46 [1] : vector<16x128xf32> to vector<16xf32>
    %117 = vector.shape_cast %116 : vector<16xf32> to vector<16x1xf32>
    %118 = vector.broadcast %117 : vector<16x1xf32> to vector<16x128xf32>
    %119 = arith.subf %114, %118 : vector<16x128xf32>
    %120 = math.exp %119 : vector<16x128xf32>
    %cst_47 = arith.constant dense<0.000000e+00> : vector<16xf32>
    %121 = vector.multi_reduction <add>, %120, %cst_47 [1] : vector<16x128xf32> to vector<16xf32>
    %122 = vector.shape_cast %121 : vector<16xf32> to vector<16x1xf32>
    %123 = math.log %122 : vector<16x1xf32>
    %124 = arith.addf %123, %117 : vector<16x1xf32>
    %125 = tpu.iota {dimensions = array<i32: 1>} : vector<16x128xi32>
    %126 = vector.broadcast %115 : vector<16x1xi32> to vector<16x128xi32>
    %127 = arith.cmpi eq, %125, %126 : vector<16x128xi32>
    %cst_48 = arith.constant 0.000000e+00 : f32
    %128 = vector.broadcast %cst_48 : f32 to vector<16x128xf32>
    %129 = arith.select %127, %114, %128 : vector<16x128xi1>, vector<16x128xf32>
    %cst_49 = arith.constant dense<0.000000e+00> : vector<16xf32>
    %130 = vector.multi_reduction <add>, %129, %cst_49 [1] : vector<16x128xf32> to vector<16xf32>
    %131 = vector.shape_cast %130 : vector<16xf32> to vector<16x1xf32>
    %c0_i32 = arith.constant 0 : i32
    %132 = vector.broadcast %c0_i32 : i32 to vector<16x1xi32>
    %133 = arith.cmpi sge, %115, %132 : vector<16x1xi32>
    %134 = arith.subf %124, %131 : vector<16x1xf32>
    %cst_50 = arith.constant 0.000000e+00 : f32
    %135 = vector.broadcast %cst_50 : f32 to vector<16x1xf32>
    %136 = arith.select %133, %134, %135 : vector<16x1xi1>, vector<16x1xf32>
    %137 = vector.shape_cast %136 : vector<16x1xf32> to vector<1x16x1xf32>
    %cst_51 = arith.constant dense<0.000000e+00> : vector<1xf32>
    %138 = vector.multi_reduction <add>, %137, %cst_51 [1, 2] : vector<1x16x1xf32> to vector<1xf32>
    %139 = vector.shape_cast %138 : vector<1xf32> to vector<1x1x1xf32>
    %140 = vector.extract %139[0, 0, 0] : f32 from vector<1x1x1xf32>
    %cst_52 = arith.constant 0.0714285746 : f32
    %141 = arith.mulf %140, %cst_52 : f32
    %c0_53 = arith.constant 0 : index
    %c0_54 = arith.constant 0 : index
    %142 = memref.load %arg10[%c0_53, %c0_54] : memref<1x1xf32, #tpu.memory_space<smem>>
    memref.store %141, %arg10[%c0_53, %c0_54] : memref<1x1xf32, #tpu.memory_space<smem>>
    return
  }
}

</mosaic_0001>

<llo_original>
// kernel: forward_loss.1
$region0: #{forward_loss.1}
  #allocation0 [shape = 'u32[]', space=smem, size = 0x4, offset = 0x4, fixed_abs, tag = 'smem constant byte address 0x4 - core index']
  #allocation1 [shape = 'u32[72,128]{1,0:T(1,128)}', space=vmem, size = 0x9000, scoped, tag = 'internal scratch']
  %s0 = inlined_call_operand.vmem [shape: bf16[16,64], index: 0, kind: input, shape index: {}]
  %s1 = inlined_call_operand.vmem [shape: s32[16,1], index: 1, kind: input, shape index: {}]
  %s2 = inlined_call_operand.vmem [shape: f32[1,64], index: 2, kind: input, shape index: {}]
  %s3 = inlined_call_operand.vmem [shape: f32[1,64], index: 3, kind: input, shape index: {}]
  %s4 = inlined_call_operand.vmem [shape: f32[1,64], index: 4, kind: input, shape index: {}]
  %s5 = inlined_call_operand.vmem [shape: bf16[64,192], index: 5, kind: input, shape index: {}]
  %s6 = inlined_call_operand.vmem [shape: bf16[64,64], index: 6, kind: input, shape index: {}]
  %s7 = inlined_call_operand.vmem [shape: bf16[64,256], index: 7, kind: input, shape index: {}]
  %s8 = inlined_call_operand.vmem [shape: bf16[128,64], index: 8, kind: input, shape index: {}]
  %s9 = inlined_call_operand.vmem [shape: bf16[64,128], index: 9, kind: input, shape index: {}]
  %s10 = inlined_call_operand.hbm [shape: f32[1,1], index: 10, kind: output, shape index: {}]
  %s11 = sld [smem:[#allocation0]]
  $region50: #{forward_loss.1} parent=0
    _
  %s13 = ssub.s32 1, %s11
  %s14 = scalar_select 0, %s13, %s11
  $region1: #{forward_loss.1} parent=0
    #allocation2 [shape = 'u8[512]{0}', space=smem, size = 0x200, scoped, tag = 'output window, operand 0, single buffered']
    #allocation3 [shape = 's32[1]{0}', space=sflag, size = 0x4, scoped, tag = 'scoped memory for forward_loss.1']
    %15 = vsyncpa [#allocation3], 0
    // Predicated region
    $region2: #{forward_loss.1} parent=1 // pred_check
      _
    $region3: #{forward_loss.1} parent=1 // pred_check_branch
      %17 = sbr.rel (0) target = $region5
    $region4: #{forward_loss.1} parent=1 // pred_region
      _
    $region5: #{forward_loss.1} parent=1 // pred_fallthru
      _
    // Predicated region
    $region6: #{forward_loss.1} parent=1 // pred_check
      _
    $region7: #{forward_loss.1} parent=1 // pred_check_branch
      %19 = sbr.rel (0) target = $region9
    $region8: #{forward_loss.1} parent=1 // pred_region
      _
    $region9: #{forward_loss.1} parent=1 // pred_fallthru
      _
    // Predicated region
    $region10: #{forward_loss.1} parent=1 // pred_check
      _
    $region11: #{forward_loss.1} parent=1 // pred_check_branch
      %21 = sbr.rel (0) target = $region13
    $region12: #{forward_loss.1} parent=1 // pred_region
      _
    $region13: #{forward_loss.1} parent=1 // pred_fallthru
      _
    // Predicated region
    $region14: #{forward_loss.1} parent=1 // pred_check
      _
    $region15: #{forward_loss.1} parent=1 // pred_check_branch
      %23 = sbr.rel (0) target = $region17
    $region16: #{forward_loss.1} parent=1 // pred_region
      _
    $region17: #{forward_loss.1} parent=1 // pred_fallthru
      _
    // Predicated region
    $region18: #{forward_loss.1} parent=1 // pred_check
      _
    $region19: #{forward_loss.1} parent=1 // pred_check_branch
      %25 = sbr.rel (0) target = $region21
    $region20: #{forward_loss.1} parent=1 // pred_region
      _
    $region21: #{forward_loss.1} parent=1 // pred_fallthru
      _
    // Predicated region
    $region22: #{forward_loss.1} parent=1 // pred_check
      _
    $region23: #{forward_loss.1} parent=1 // pred_check_branch
      %27 = sbr.rel (0) target = $region25
    $region24: #{forward_loss.1} parent=1 // pred_region
      _
    $region25: #{forward_loss.1} parent=1 // pred_fallthru
      _
    // Predicated region
    $region26: #{forward_loss.1} parent=1 // pred_check
      _
    $region27: #{forward_loss.1} parent=1 // pred_check_branch
      %29 = sbr.rel (0) target = $region29
    $region28: #{forward_loss.1} parent=1 // pred_region
      _
    $region29: #{forward_loss.1} parent=1 // pred_fallthru
      _
    // Predicated region
    $region30: #{forward_loss.1} parent=1 // pred_check
      _
    $region31: #{forward_loss.1} parent=1 // pred_check_branch
      %31 = sbr.rel (0) target = $region33
    $region32: #{forward_loss.1} parent=1 // pred_region
      _
    $region33: #{forward_loss.1} parent=1 // pred_fallthru
      _
    // Predicated region
    $region34: #{forward_loss.1} parent=1 // pred_check
      _
    $region35: #{forward_loss.1} parent=1 // pred_check_branch
      %33 = sbr.rel (0) target = $region37
    $region36: #{forward_loss.1} parent=1 // pred_region
      _
    $region37: #{forward_loss.1} parent=1 // pred_fallthru
      _
    // Predicated region
    $region38: #{forward_loss.1} parent=1 // pred_check
      _
    $region39: #{forward_loss.1} parent=1 // pred_check_branch
      %35 = sbr.rel (0) target = $region41
    $region40: #{forward_loss.1} parent=1 // pred_region
      _
    $region41: #{forward_loss.1} parent=1 // pred_fallthru
      _
    %v37 = vld [vmem:[%s0] sm:$0xf]
    %v38 = vld [vmem:[%s0 + $0x4] sm:$0xf]
    %v39 = vunpack.c.l.bf16 %v37
    %v40 = vunpack.c.l.bf16 %v38
    %v41 = vmul.f32 %v39, %v39
    %v42 = vmul.f32 %v40, %v40
    %vm43 = vcmask 523264
    %v44 = vsel %vm43, %v41, 0.0
    %45 = vadd.xlane.f32.xlu0 %v44
    %v46 = vpop.xlane.xlu0 %45
    %v47 = vsel %vm43, %v42, 0.0
    %48 = vadd.xlane.f32.xlu0 %v47
    %v49 = vpop.xlane.xlu0 %48
    %v50 = vrcp.pop 64.0
    %v51 = vmul.f32 64.0, %v50
    %v52 = vsub.f32 1.0, %v51
    %v53 = vmul.f32 %v50, %v52
    %v54 = vadd.f32 %v50, %v53
    %vm55 = vweird.f32 %v50
    %v56 = vsel %vm55, %v50, %v54
    %v57 = vmul.f32 %v46, %v56
    %v58 = vmul.f32 %v49, %v56
    %v59 = vadd.f32 %v57, 1e-06
    %v60 = vadd.f32 %v58, 1e-06
    %v61 = vrsqrt.pop %v59
    %v62 = vmul.f32 %v61, %v59
    %v63 = vmul.f32 %v62, %v61
    %v64 = vmul.f32 0.5, %v63
    %v65 = vsub.f32 1.5, %v64
    %v66 = vmul.f32 %v61, %v65
    %vm67 = vweird.f32 %v59
    %vm68 = vweird.f32 %v61
    %vm69 = vmor %vm67, %vm68
    %v70 = vsel %vm69, %v61, %v66
    %v71 = vrsqrt.pop %v60
    %v72 = vmul.f32 %v71, %v60
    %v73 = vmul.f32 %v72, %v71
    %v74 = vmul.f32 0.5, %v73
    %v75 = vsub.f32 1.5, %v74
    %v76 = vmul.f32 %v71, %v75
    %vm77 = vweird.f32 %v60
    %vm78 = vweird.f32 %v71
    %vm79 = vmor %vm77, %vm78
    %v80 = vsel %vm79, %v71, %v76
    %v81 = vmul.f32 %v39, %v70
    %v82 = vmul.f32 %v40, %v80
    %v83 = vld [vmem:[%s2] sm:$0x1]
    %v85 = vperm.slane %v83, 0
    %v87 = vmul.f32 %v81, %v85
    %v88 = vmul.f32 %v82, %v85
    %v89 = vpack.c.bf16 %v88, %v87
    %v90 = vld [vmem:[%s5] sm:$0xff]
    %v91 = vld [vmem:[%s5 + $0x8] sm:$0xff]
    %v92 = vld [vmem:[%s5 + $0x10] sm:$0xff]
    %v93 = vld [vmem:[%s5 + $0x18] sm:$0xff]
    %v94 = vld [vmem:[%s5 + $0x20] sm:$0xff]
    %v95 = vld [vmem:[%s5 + $0x28] sm:$0xff]
    %v96 = vld [vmem:[%s5 + $0x30] sm:$0xff]
    %v97 = vld [vmem:[%s5 + $0x38] sm:$0xff]
    %v106 = vunpack.c.l.b16 %v90
    %v107 = vunpack.c.h.b16 %v90
    %v108 = vunpack.c.l.b16 %v91
    %v109 = vunpack.c.h.b16 %v91
    %v110 = vunpack.c.l.b16 %v92
    %v111 = vunpack.c.h.b16 %v92
    %v112 = vunpack.c.l.b16 %v93
    %v113 = vunpack.c.h.b16 %v93
    %v114 = vunpack.c.l.b16 %v94
    %v115 = vunpack.c.h.b16 %v94
    %v116 = vunpack.c.l.b16 %v95
    %v117 = vunpack.c.h.b16 %v95
    %v118 = vunpack.c.l.b16 %v96
    %v119 = vunpack.c.h.b16 %v96
    %v120 = vunpack.c.l.b16 %v97
    %v121 = vunpack.c.h.b16 %v97
    %v122 = vpack.c.b16 %v108, %v106
    %v123 = vpack.c.b16 %v109, %v107
    %v124 = vpack.c.b16 %v112, %v110
    %v125 = vpack.c.b16 %v113, %v111
    %v126 = vpack.c.b16 %v116, %v114
    %v127 = vpack.c.b16 %v117, %v115
    %v128 = vpack.c.b16 %v120, %v118
    %v129 = vpack.c.b16 %v121, %v119
    %v139 = vsel %vm43, %v89, 0
    %141 = vmatpush.bf16.msra.mxu0 0
    %142 = vmatpush.bf16.msra.mxu0 0
    %143 = vmatpush.bf16.msra.mxu0 0
    %144 = vmatpush.bf16.msra.mxu0 0
    %145 = vmatpush.bf16.msra.mxu0 %v128
    %146 = vmatpush.bf16.msra.mxu0 %v126
    %147 = vmatpush.bf16.msra.mxu0 %v124
    %148 = vmatpush.bf16.msra.mxu0 %v122
    %149 = vmatmul.bf16.gmra.mxu0 %v139
    %v150 = vpop.f32.mrf.mxu0
    %v151 = vadd.f32 0.0, %v150
    %v152 = vpop.f32.mrf.mxu0
    %v153 = vadd.f32 0.0, %v152
    %154 = vdwg.mxu0
    %155 = vmatpush.bf16.msra.mxu0 0
    %156 = vmatpush.bf16.msra.mxu0 0
    %157 = vmatpush.bf16.msra.mxu0 0
    %158 = vmatpush.bf16.msra.mxu0 0
    %159 = vmatpush.bf16.msra.mxu0 %v129
    %160 = vmatpush.bf16.msra.mxu0 %v127
    %161 = vmatpush.bf16.msra.mxu0 %v125
    %162 = vmatpush.bf16.msra.mxu0 %v123
    %163 = vmatmul.bf16.gmra.mxu0 %v139
    %v164 = vpop.f32.mrf.mxu0
    %v165 = vadd.f32 0.0, %v164
    %v166 = vpop.f32.mrf.mxu0
    %v167 = vadd.f32 0.0, %v166
    %168 = vdwg.mxu0
    %v169 = vpack.c.bf16 %v165, %v151
    %v170 = vpack.c.bf16 %v167, %v153
    %v171 = vlaneseq
    %v172 = vshrl.u32 %v171, 7
    %v173 = vlaneseq
    %v174 = vand.u32 %v173, 127
    %vm175 = vcmp.le.s32.totalorder %v174, %v172
    %v177 = vunpack.c.l.b16 %v169
    %v178 = vpack.c.b16 %v177, %v177
    %179 = vrot.lane.b32.xlu0 %v178, 64
    %v180 = vpop.permute.xlu0 %179
    %vm181 = vcmask 261120
    %v183 = vsel %vm181, %v169, 0
    %v186 = vsel %vm181, %v180, 0
    %188 = vmatpush.bf16.xpose.msra.mxu0 0
    %189 = vmatpush.bf16.xpose.msra.mxu0 0
    %190 = vmatpush.bf16.xpose.msra.mxu0 0
    %191 = vmatpush.bf16.xpose.msra.mxu0 0
    %192 = vmatpush.bf16.xpose.msra.mxu0 0
    %193 = vmatpush.bf16.xpose.msra.mxu0 0
    %194 = vmatpush.bf16.xpose.msra.mxu0 0
    %195 = vmatpush.bf16.xpose.msra.mxu0 %v186
    %196 = vmatmul.bf16.gmra.mxu0 %v183
    %v197 = vpop.f32.mrf.mxu0
    %v198 = vadd.f32 0.0, %v197
    %v199 = vpop.f32.mrf.mxu0
    %200 = vdwg.mxu0
    %v202 = vunpack.c.l.b16 %v170
    %v203 = vpack.c.b16 %v202, %v202
    %204 = vrot.lane.b32.xlu0 %v203, 64
    %v205 = vpop.permute.xlu0 %204
    %v207 = vsel %vm181, %v170, 0
    %v210 = vsel %vm181, %v205, 0
    %212 = vmatpush.bf16.xpose.msra.mxu0 0
    %213 = vmatpush.bf16.xpose.msra.mxu0 0
    %214 = vmatpush.bf16.xpose.msra.mxu0 0
    %215 = vmatpush.bf16.xpose.msra.mxu0 0
    %216 = vmatpush.bf16.xpose.msra.mxu0 0
    %217 = vmatpush.bf16.xpose.msra.mxu0 0
    %218 = vmatpush.bf16.xpose.msra.mxu0 0
    %219 = vmatpush.bf16.xpose.msra.mxu0 %v210
    %220 = vmatmul.bf16.gmra.mxu0 %v207
    %v221 = vpop.f32.mrf.mxu0
    %v222 = vadd.f32 0.0, %v221
    %v223 = vpop.f32.mrf.mxu0
    %224 = vdwg.mxu0
    %v225 = vmul.f32 %v198, 0.17677669
    %v226 = vmul.f32 %v222, 0.17677669
    %v227 = vsel %vm175, %v225, -1e+30
    %v228 = vsel %vm175, %v226, -1e+30
    %vm229 = vcmask 64512
    %v230 = vsel %vm229, %v227, -inf
    %231 = vmax.xlane.f32.xlu0 %v230
    %v232 = vpop.xlane.xlu0 %231
    %v233 = vsel %vm229, %v228, -inf
    %234 = vmax.xlane.f32.xlu0 %v233
    %v235 = vpop.xlane.xlu0 %234
    %v236 = vsub.f32 %v227, %v232
    %v237 = vsub.f32 %v228, %v235
    %v238 = vmul.f32 %v236, 1.442695
    %v239 = vpow.pop %v238
    %v240 = vmul.f32 %v237, 1.442695
    %v241 = vpow.pop %v240
    %v242 = vsel %vm229, %v239, 0.0
    %243 = vadd.xlane.f32.xlu0 %v242
    %v244 = vpop.xlane.xlu0 %243
    %v245 = vsel %vm229, %v241, 0.0
    %246 = vadd.xlane.f32.xlu0 %v245
    %v247 = vpop.xlane.xlu0 %246
    %v248 = vrcp.pop %v244
    %v249 = vrcp.pop %v247
    %v250 = vmul.f32 %v239, %v248
    %v251 = vmul.f32 %v241, %v249
    %v252 = vpack.c.bf16 %v250, %v250
    %v253 = vpack.c.bf16 %v251, %v251
    %v254 = vrot.slane %v169, 4
    %v256 = vsel %vm229, %v252, 0
    %vm258 = vcmask 1043456
    %v260 = vsel %vm258, %v254, 0
    %262 = vmatpush.bf16.msra.mxu0 0
    %263 = vmatpush.bf16.msra.mxu0 0
    %264 = vmatpush.bf16.msra.mxu0 0
    %265 = vmatpush.bf16.msra.mxu0 0
    %266 = vmatpush.bf16.msra.mxu0 0
    %267 = vmatpush.bf16.msra.mxu0 0
    %268 = vmatpush.bf16.msra.mxu0 0
    %269 = vmatpush.bf16.msra.mxu0 %v260
    %270 = vmatmul.bf16.gmra.mxu0 %v256
    %v271 = vpop.f32.mrf.mxu0
    %v272 = vadd.f32 0.0, %v271
    %v273 = vpop.f32.mrf.mxu0
    %274 = vdwg.mxu0
    %v275 = vrot.slane %v170, 4
    %v277 = vsel %vm229, %v253, 0
    %v280 = vsel %vm258, %v275, 0
    %282 = vmatpush.bf16.msra.mxu0 0
    %283 = vmatpush.bf16.msra.mxu0 0
    %284 = vmatpush.bf16.msra.mxu0 0
    %285 = vmatpush.bf16.msra.mxu0 0
    %286 = vmatpush.bf16.msra.mxu0 0
    %287 = vmatpush.bf16.msra.mxu0 0
    %288 = vmatpush.bf16.msra.mxu0 0
    %289 = vmatpush.bf16.msra.mxu0 %v280
    %290 = vmatmul.bf16.gmra.mxu0 %v277
    %v291 = vpop.f32.mrf.mxu0
    %v292 = vadd.f32 0.0, %v291
    %v293 = vpop.f32.mrf.mxu0
    %294 = vdwg.mxu0
    %295 = vrot.lane.b32.xlu0 %v178, 96
    %v296 = vpop.permute.xlu0 %295
    %297 = vrot.lane.b32.xlu0 %v178, 32
    %v298 = vpop.permute.xlu0 %297
    %v300 = vsel %vm181, %v296, 0
    %v303 = vsel %vm181, %v298, 0
    %305 = vmatpush.bf16.xpose.msra.mxu0 0
    %306 = vmatpush.bf16.xpose.msra.mxu0 0
    %307 = vmatpush.bf16.xpose.msra.mxu0 0
    %308 = vmatpush.bf16.xpose.msra.mxu0 0
    %309 = vmatpush.bf16.xpose.msra.mxu0 0
    %310 = vmatpush.bf16.xpose.msra.mxu0 0
    %311 = vmatpush.bf16.xpose.msra.mxu0 0
    %312 = vmatpush.bf16.xpose.msra.mxu0 %v303
    %313 = vmatmul.bf16.gmra.mxu0 %v300
    %v314 = vpop.f32.mrf.mxu0
    %v315 = vadd.f32 0.0, %v314
    %v316 = vpop.f32.mrf.mxu0
    %317 = vdwg.mxu0
    %318 = vrot.lane.b32.xlu0 %v203, 96
    %v319 = vpop.permute.xlu0 %318
    %320 = vrot.lane.b32.xlu0 %v203, 32
    %v321 = vpop.permute.xlu0 %320
    %v323 = vsel %vm181, %v319, 0
    %v326 = vsel %vm181, %v321, 0
    %328 = vmatpush.bf16.xpose.msra.mxu0 0
    %329 = vmatpush.bf16.xpose.msra.mxu0 0
    %330 = vmatpush.bf16.xpose.msra.mxu0 0
    %331 = vmatpush.bf16.xpose.msra.mxu0 0
    %332 = vmatpush.bf16.xpose.msra.mxu0 0
    %333 = vmatpush.bf16.xpose.msra.mxu0 0
    %334 = vmatpush.bf16.xpose.msra.mxu0 0
    %335 = vmatpush.bf16.xpose.msra.mxu0 %v326
    %336 = vmatmul.bf16.gmra.mxu0 %v323
    %v337 = vpop.f32.mrf.mxu0
    %v338 = vadd.f32 0.0, %v337
    %v339 = vpop.f32.mrf.mxu0
    %340 = vdwg.mxu0
    %v341 = vmul.f32 %v315, 0.17677669
    %v342 = vmul.f32 %v338, 0.17677669
    %v343 = vsel %vm175, %v341, -1e+30
    %v344 = vsel %vm175, %v342, -1e+30
    %v345 = vsel %vm229, %v343, -inf
    %346 = vmax.xlane.f32.xlu0 %v345
    %v347 = vpop.xlane.xlu0 %346
    %v348 = vsel %vm229, %v344, -inf
    %349 = vmax.xlane.f32.xlu0 %v348
    %v350 = vpop.xlane.xlu0 %349
    %v351 = vsub.f32 %v343, %v347
    %v352 = vsub.f32 %v344, %v350
    %v353 = vmul.f32 %v351, 1.442695
    %v354 = vpow.pop %v353
    %v355 = vmul.f32 %v352, 1.442695
    %v356 = vpow.pop %v355
    %v357 = vsel %vm229, %v354, 0.0
    %358 = vadd.xlane.f32.xlu0 %v357
    %v359 = vpop.xlane.xlu0 %358
    %v360 = vsel %vm229, %v356, 0.0
    %361 = vadd.xlane.f32.xlu0 %v360
    %v362 = vpop.xlane.xlu0 %361
    %v363 = vrcp.pop %v359
    %v364 = vrcp.pop %v362
    %v365 = vmul.f32 %v354, %v363
    %v366 = vmul.f32 %v356, %v364
    %v367 = vpack.c.bf16 %v365, %v365
    %v368 = vpack.c.bf16 %v366, %v366
    %369 = vrot.lane.b32.xlu0 %v169, 96
    %v370 = vpop.permute.xlu0 %369
    %v371 = vrot.slane %v370, 4
    %v373 = vsel %vm229, %v367, 0
    %v376 = vsel %vm258, %v371, 0
    %378 = vmatpush.bf16.msra.mxu0 0
    %379 = vmatpush.bf16.msra.mxu0 0
    %380 = vmatpush.bf16.msra.mxu0 0
    %381 = vmatpush.bf16.msra.mxu0 0
    %382 = vmatpush.bf16.msra.mxu0 0
    %383 = vmatpush.bf16.msra.mxu0 0
    %384 = vmatpush.bf16.msra.mxu0 0
    %385 = vmatpush.bf16.msra.mxu0 %v376
    %386 = vmatmul.bf16.gmra.mxu0 %v373
    %v387 = vpop.f32.mrf.mxu0
    %v388 = vadd.f32 0.0, %v387
    %v389 = vpop.f32.mrf.mxu0
    %390 = vdwg.mxu0
    %391 = vrot.lane.b32.xlu0 %v170, 96
    %v392 = vpop.permute.xlu0 %391
    %v393 = vrot.slane %v392, 4
    %v395 = vsel %vm229, %v368, 0
    %v398 = vsel %vm258, %v393, 0
    %400 = vmatpush.bf16.msra.mxu0 0
    %401 = vmatpush.bf16.msra.mxu0 0
    %402 = vmatpush.bf16.msra.mxu0 0
    %403 = vmatpush.bf16.msra.mxu0 0
    %404 = vmatpush.bf16.msra.mxu0 0
    %405 = vmatpush.bf16.msra.mxu0 0
    %406 = vmatpush.bf16.msra.mxu0 0
    %407 = vmatpush.bf16.msra.mxu0 %v398
    %408 = vmatmul.bf16.gmra.mxu0 %v395
    %v409 = vpop.f32.mrf.mxu0
    %v410 = vadd.f32 0.0, %v409
    %v411 = vpop.f32.mrf.mxu0
    %412 = vdwg.mxu0
    %415 = vrot.lane.b32.xlu0 %v388, 32
    %v416 = vpop.permute.xlu0 %415
    %417 = vrot.lane.b32.xlu0 %v410, 32
    %v418 = vpop.permute.xlu0 %417
    %v421 = vsel %vm181, %v272, %v416
    %v422 = vsel %vm181, %v292, %v418
    %v423 = vpack.c.bf16 %v422, %v421
    %v424 = vld [vmem:[%s6] sm:$0xf]
    %v425 = vld [vmem:[%s6 + $0x4] sm:$0xf]
    %v426 = vld [vmem:[%s6 + $0x8] sm:$0xf]
    %v427 = vld [vmem:[%s6 + $0xc] sm:$0xf]
    %v428 = vld [vmem:[%s6 + $0x10] sm:$0xf]
    %v429 = vld [vmem:[%s6 + $0x14] sm:$0xf]
    %v430 = vld [vmem:[%s6 + $0x18] sm:$0xf]
    %v431 = vld [vmem:[%s6 + $0x1c] sm:$0xf]
    %v440 = vunpack.c.l.b16 %v424
    %v441 = vunpack.c.l.b16 %v425
    %v442 = vunpack.c.l.b16 %v426
    %v443 = vunpack.c.l.b16 %v427
    %v444 = vunpack.c.l.b16 %v428
    %v445 = vunpack.c.l.b16 %v429
    %v446 = vunpack.c.l.b16 %v430
    %v447 = vunpack.c.l.b16 %v431
    %v448 = vpack.c.b16 %v441, %v440
    %v449 = vpack.c.b16 %v443, %v442
    %v450 = vpack.c.b16 %v445, %v444
    %v451 = vpack.c.b16 %v447, %v446
    %v457 = vsel %vm43, %v423, 0
    %459 = vmatpush.bf16.msra.mxu0 0
    %460 = vmatpush.bf16.msra.mxu0 0
    %461 = vmatpush.bf16.msra.mxu0 0
    %462 = vmatpush.bf16.msra.mxu0 0
    %463 = vmatpush.bf16.msra.mxu0 %v451
    %464 = vmatpush.bf16.msra.mxu0 %v450
    %465 = vmatpush.bf16.msra.mxu0 %v449
    %466 = vmatpush.bf16.msra.mxu0 %v448
    %467 = vmatmul.bf16.gmra.mxu0 %v457
    %v468 = vpop.f32.mrf.mxu0
    %v469 = vadd.f32 0.0, %v468
    %v470 = vpop.f32.mrf.mxu0
    %v471 = vadd.f32 0.0, %v470
    %472 = vdwg.mxu0
    %v473 = vadd.f32 %v39, %v469
    %v474 = vadd.f32 %v40, %v471
    %v475 = vmul.f32 %v473, %v473
    %v476 = vmul.f32 %v474, %v474
    %v477 = vsel %vm43, %v475, 0.0
    %478 = vadd.xlane.f32.xlu0 %v477
    %v479 = vpop.xlane.xlu0 %478
    %v480 = vsel %vm43, %v476, 0.0
    %481 = vadd.xlane.f32.xlu0 %v480
    %v482 = vpop.xlane.xlu0 %481
    %v483 = vmul.f32 %v479, %v56
    %v484 = vmul.f32 %v482, %v56
    %v485 = vadd.f32 %v483, 1e-06
    %v486 = vadd.f32 %v484, 1e-06
    %v487 = vrsqrt.pop %v485
    %v488 = vmul.f32 %v487, %v485
    %v489 = vmul.f32 %v488, %v487
    %v490 = vmul.f32 0.5, %v489
    %v491 = vsub.f32 1.5, %v490
    %v492 = vmul.f32 %v487, %v491
    %vm493 = vweird.f32 %v485
    %vm494 = vweird.f32 %v487
    %vm495 = vmor %vm493, %vm494
    %v496 = vsel %vm495, %v487, %v492
    %v497 = vrsqrt.pop %v486
    %v498 = vmul.f32 %v497, %v486
    %v499 = vmul.f32 %v498, %v497
    %v500 = vmul.f32 0.5, %v499
    %v501 = vsub.f32 1.5, %v500
    %v502 = vmul.f32 %v497, %v501
    %vm503 = vweird.f32 %v486
    %vm504 = vweird.f32 %v497
    %vm505 = vmor %vm503, %vm504
    %v506 = vsel %vm505, %v497, %v502
    %v507 = vmul.f32 %v473, %v496
    %v508 = vmul.f32 %v474, %v506
    %v509 = vld [vmem:[%s3] sm:$0x1]
    %v511 = vperm.slane %v509, 0
    %v513 = vmul.f32 %v507, %v511
    %v514 = vmul.f32 %v508, %v511
    %v515 = vpack.c.bf16 %v514, %v513
    %v516 = vld [vmem:[%s7] sm:$0xff]
    %v517 = vld [vmem:[%s7 + $0x8] sm:$0xff]
    %v518 = vld [vmem:[%s7 + $0x10] sm:$0xff]
    %v519 = vld [vmem:[%s7 + $0x18] sm:$0xff]
    %v520 = vld [vmem:[%s7 + $0x20] sm:$0xff]
    %v521 = vld [vmem:[%s7 + $0x28] sm:$0xff]
    %v522 = vld [vmem:[%s7 + $0x30] sm:$0xff]
    %v523 = vld [vmem:[%s7 + $0x38] sm:$0xff]
    %v532 = vunpack.c.l.b16 %v516
    %v533 = vunpack.c.h.b16 %v516
    %v534 = vunpack.c.l.b16 %v517
    %v535 = vunpack.c.h.b16 %v517
    %v536 = vunpack.c.l.b16 %v518
    %v537 = vunpack.c.h.b16 %v518
    %v538 = vunpack.c.l.b16 %v519
    %v539 = vunpack.c.h.b16 %v519
    %v540 = vunpack.c.l.b16 %v520
    %v541 = vunpack.c.h.b16 %v520
    %v542 = vunpack.c.l.b16 %v521
    %v543 = vunpack.c.h.b16 %v521
    %v544 = vunpack.c.l.b16 %v522
    %v545 = vunpack.c.h.b16 %v522
    %v546 = vunpack.c.l.b16 %v523
    %v547 = vunpack.c.h.b16 %v523
    %v548 = vpack.c.b16 %v534, %v532
    %v549 = vpack.c.b16 %v535, %v533
    %v550 = vpack.c.b16 %v538, %v536
    %v551 = vpack.c.b16 %v539, %v537
    %v552 = vpack.c.b16 %v542, %v540
    %v553 = vpack.c.b16 %v543, %v541
    %v554 = vpack.c.b16 %v546, %v544
    %v555 = vpack.c.b16 %v547, %v545
    %v565 = vsel %vm43, %v515, 0
    %567 = vmatpush.bf16.msra.mxu0 0
    %568 = vmatpush.bf16.msra.mxu0 0
    %569 = vmatpush.bf16.msra.mxu0 0
    %570 = vmatpush.bf16.msra.mxu0 0
    %571 = vmatpush.bf16.msra.mxu0 %v554
    %572 = vmatpush.bf16.msra.mxu0 %v552
    %573 = vmatpush.bf16.msra.mxu0 %v550
    %574 = vmatpush.bf16.msra.mxu0 %v548
    %575 = vmatmul.bf16.gmra.mxu0 %v565
    %v576 = vpop.f32.mrf.mxu0
    %v577 = vadd.f32 0.0, %v576
    %v578 = vpop.f32.mrf.mxu0
    %v579 = vadd.f32 0.0, %v578
    %580 = vdwg.mxu0
    %581 = vmatpush.bf16.msra.mxu0 0
    %582 = vmatpush.bf16.msra.mxu0 0
    %583 = vmatpush.bf16.msra.mxu0 0
    %584 = vmatpush.bf16.msra.mxu0 0
    %585 = vmatpush.bf16.msra.mxu0 %v555
    %586 = vmatpush.bf16.msra.mxu0 %v553
    %587 = vmatpush.bf16.msra.mxu0 %v551
    %588 = vmatpush.bf16.msra.mxu0 %v549
    %589 = vmatmul.bf16.gmra.mxu0 %v565
    %v590 = vpop.f32.mrf.mxu0
    %v591 = vadd.f32 0.0, %v590
    %v592 = vpop.f32.mrf.mxu0
    %v593 = vadd.f32 0.0, %v592
    %594 = vdwg.mxu0
    %v595 = vsub.f32 0.0, %v577
    %v596 = vsub.f32 0.0, %v579
    %v597 = vmul.f32 %v595, 1.442695
    %v598 = vpow.pop %v597
    %v599 = vmul.f32 %v596, 1.442695
    %v600 = vpow.pop %v599
    %v601 = vadd.f32 %v598, 1.0
    %v602 = vadd.f32 %v600, 1.0
    %v603 = vrcp.pop %v601
    %v604 = vrcp.pop %v602
    %v605 = vmul.f32 %v577, %v603
    %v606 = vmul.f32 %v579, %v604
    %v607 = vmul.f32 %v605, %v591
    %v608 = vmul.f32 %v606, %v593
    %v609 = vpack.c.bf16 %v608, %v607
    %v610 = vld [vmem:[%s8] sm:$0xf]
    %v611 = vld [vmem:[%s8 + $0x4] sm:$0xf]
    %v612 = vld [vmem:[%s8 + $0x8] sm:$0xf]
    %v613 = vld [vmem:[%s8 + $0xc] sm:$0xf]
    %v614 = vld [vmem:[%s8 + $0x10] sm:$0xf]
    %v615 = vld [vmem:[%s8 + $0x14] sm:$0xf]
    %v616 = vld [vmem:[%s8 + $0x18] sm:$0xf]
    %v617 = vld [vmem:[%s8 + $0x1c] sm:$0xf]
    %v618 = vld [vmem:[%s8 + $0x20] sm:$0xf]
    %v619 = vld [vmem:[%s8 + $0x24] sm:$0xf]
    %v620 = vld [vmem:[%s8 + $0x28] sm:$0xf]
    %v621 = vld [vmem:[%s8 + $0x2c] sm:$0xf]
    %v622 = vld [vmem:[%s8 + $0x30] sm:$0xf]
    %v623 = vld [vmem:[%s8 + $0x34] sm:$0xf]
    %v624 = vld [vmem:[%s8 + $0x38] sm:$0xf]
    %v625 = vld [vmem:[%s8 + $0x3c] sm:$0xf]
    %v642 = vunpack.c.l.b16 %v610
    %v643 = vunpack.c.l.b16 %v611
    %v644 = vunpack.c.l.b16 %v612
    %v645 = vunpack.c.l.b16 %v613
    %v646 = vunpack.c.l.b16 %v614
    %v647 = vunpack.c.l.b16 %v615
    %v648 = vunpack.c.l.b16 %v616
    %v649 = vunpack.c.l.b16 %v617
    %v650 = vunpack.c.l.b16 %v618
    %v651 = vunpack.c.l.b16 %v619
    %v652 = vunpack.c.l.b16 %v620
    %v653 = vunpack.c.l.b16 %v621
    %v654 = vunpack.c.l.b16 %v622
    %v655 = vunpack.c.l.b16 %v623
    %v656 = vunpack.c.l.b16 %v624
    %v657 = vunpack.c.l.b16 %v625
    %v658 = vpack.c.b16 %v643, %v642
    %v659 = vpack.c.b16 %v645, %v644
    %v660 = vpack.c.b16 %v647, %v646
    %v661 = vpack.c.b16 %v649, %v648
    %v662 = vpack.c.b16 %v651, %v650
    %v663 = vpack.c.b16 %v653, %v652
    %v664 = vpack.c.b16 %v655, %v654
    %v665 = vpack.c.b16 %v657, %v656
    %674 = vmatpush.bf16.msra.mxu0 %v665
    %675 = vmatpush.bf16.msra.mxu0 %v664
    %676 = vmatpush.bf16.msra.mxu0 %v663
    %677 = vmatpush.bf16.msra.mxu0 %v662
    %678 = vmatpush.bf16.msra.mxu0 %v661
    %679 = vmatpush.bf16.msra.mxu0 %v660
    %680 = vmatpush.bf16.msra.mxu0 %v659
    %681 = vmatpush.bf16.msra.mxu0 %v658
    %682 = vmatmul.bf16.gmra.mxu0 %v609
    %v683 = vpop.f32.mrf.mxu0
    %v684 = vadd.f32 0.0, %v683
    %v685 = vpop.f32.mrf.mxu0
    %v686 = vadd.f32 0.0, %v685
    %687 = vdwg.mxu0
    %v688 = vadd.f32 %v473, %v684
    %v689 = vadd.f32 %v474, %v686
    %v690 = vmul.f32 %v688, %v688
    %v691 = vmul.f32 %v689, %v689
    %v692 = vsel %vm43, %v690, 0.0
    %693 = vadd.xlane.f32.xlu0 %v692
    %v694 = vpop.xlane.xlu0 %693
    %v695 = vsel %vm43, %v691, 0.0
    %696 = vadd.xlane.f32.xlu0 %v695
    %v697 = vpop.xlane.xlu0 %696
    %v698 = vmul.f32 %v694, %v56
    %v699 = vmul.f32 %v697, %v56
    %v700 = vadd.f32 %v698, 1e-06
    %v701 = vadd.f32 %v699, 1e-06
    %v702 = vrsqrt.pop %v700
    %v703 = vmul.f32 %v702, %v700
    %v704 = vmul.f32 %v703, %v702
    %v705 = vmul.f32 0.5, %v704
    %v706 = vsub.f32 1.5, %v705
    %v707 = vmul.f32 %v702, %v706
    %vm708 = vweird.f32 %v700
    %vm709 = vweird.f32 %v702
    %vm710 = vmor %vm708, %vm709
    %v711 = vsel %vm710, %v702, %v707
    %v712 = vrsqrt.pop %v701
    %v713 = vmul.f32 %v712, %v701
    %v714 = vmul.f32 %v713, %v712
    %v715 = vmul.f32 0.5, %v714
    %v716 = vsub.f32 1.5, %v715
    %v717 = vmul.f32 %v712, %v716
    %vm718 = vweird.f32 %v701
    %vm719 = vweird.f32 %v712
    %vm720 = vmor %vm718, %vm719
    %v721 = vsel %vm720, %v712, %v717
    %v722 = vmul.f32 %v688, %v711
    %v723 = vmul.f32 %v689, %v721
    %v724 = vld [vmem:[%s4] sm:$0x1]
    %v726 = vperm.slane %v724, 0
    %v728 = vmul.f32 %v722, %v726
    %v729 = vmul.f32 %v723, %v726
    %v730 = vpack.c.bf16 %v729, %v728
    %v731 = vld [vmem:[%s9] sm:$0xf]
    %v732 = vld [vmem:[%s9 + $0x4] sm:$0xf]
    %v733 = vld [vmem:[%s9 + $0x8] sm:$0xf]
    %v734 = vld [vmem:[%s9 + $0xc] sm:$0xf]
    %v735 = vld [vmem:[%s9 + $0x10] sm:$0xf]
    %v736 = vld [vmem:[%s9 + $0x14] sm:$0xf]
    %v737 = vld [vmem:[%s9 + $0x18] sm:$0xf]
    %v738 = vld [vmem:[%s9 + $0x1c] sm:$0xf]
    %v747 = vunpack.c.l.b16 %v731
    %v748 = vunpack.c.l.b16 %v732
    %v749 = vunpack.c.l.b16 %v733
    %v750 = vunpack.c.l.b16 %v734
    %v751 = vunpack.c.l.b16 %v735
    %v752 = vunpack.c.l.b16 %v736
    %v753 = vunpack.c.l.b16 %v737
    %v754 = vunpack.c.l.b16 %v738
    %v755 = vpack.c.b16 %v748, %v747
    %v756 = vpack.c.b16 %v750, %v749
    %v757 = vpack.c.b16 %v752, %v751
    %v758 = vpack.c.b16 %v754, %v753
    %v764 = vsel %vm43, %v730, 0
    %766 = vmatpush.bf16.msra.mxu0 0
    %767 = vmatpush.bf16.msra.mxu0 0
    %768 = vmatpush.bf16.msra.mxu0 0
    %769 = vmatpush.bf16.msra.mxu0 0
    %770 = vmatpush.bf16.msra.mxu0 %v758
    %771 = vmatpush.bf16.msra.mxu0 %v757
    %772 = vmatpush.bf16.msra.mxu0 %v756
    %773 = vmatpush.bf16.msra.mxu0 %v755
    %774 = vmatmul.bf16.gmra.mxu0 %v764
    %v775 = vpop.f32.mrf.mxu0
    %v776 = vadd.f32 0.0, %v775
    %v777 = vpop.f32.mrf.mxu0
    %v778 = vadd.f32 0.0, %v777
    %779 = vdwg.mxu0
    %v780 = vld [vmem:[%s1] sm:$0xff]
    %v781 = vld [vmem:[%s1 + $0x8] sm:$0xff]
    %782 = vmax.xlane.f32.xlu0 %v776
    %v783 = vpop.xlane.xlu0 %782
    %784 = vmax.xlane.f32.xlu0 %v778
    %v785 = vpop.xlane.xlu0 %784
    %v786 = vsub.f32 %v776, %v783
    %v787 = vsub.f32 %v778, %v785
    %v788 = vmul.f32 %v786, 1.442695
    %v789 = vpow.pop %v788
    %v790 = vmul.f32 %v787, 1.442695
    %v791 = vpow.pop %v790
    %792 = vadd.xlane.f32.xlu0 %v789
    %v793 = vpop.xlane.xlu0 %792
    %794 = vadd.xlane.f32.xlu0 %v791
    %v795 = vpop.xlane.xlu0 %794
    %v796 = vlog2.pop %v793
    %v797 = vmul.f32 %v796, 0.6931472
    %v798 = vlog2.pop %v795
    %v799 = vmul.f32 %v798, 0.6931472
    %v800 = vadd.f32 %v797, %v783
    %v801 = vadd.f32 %v799, %v785
    %802 = vset.pattern.permute.xlu0 0
    %803 = vperm.xlu0 %802, %v780
    %v804 = vpop.permute.xlu0 %803
    %805 = vset.pattern.permute.xlu0 0
    %806 = vperm.xlu0 %805, %v781
    %v807 = vpop.permute.xlu0 %806
    %vm808 = vcmp.eq.s32.totalorder %v174, %v804
    %vm809 = vcmp.eq.s32.totalorder %v174, %v807
    %v810 = vsel %vm808, %v776, 0.0
    %v811 = vsel %vm809, %v778, 0.0
    %812 = vadd.xlane.f32.xlu0 %v810
    %v813 = vpop.xlane.xlu0 %812
    %814 = vadd.xlane.f32.xlu0 %v811
    %v815 = vpop.xlane.xlu0 %814
    %vm816 = vcmp.ge.s32.totalorder %v780, 0
    %vm817 = vcmp.ge.s32.totalorder %v781, 0
    %v818 = vsub.f32 %v800, %v813
    %v819 = vsub.f32 %v801, %v815
    %v820 = vsel %vm816, %v818, 0.0
    %v821 = vsel %vm817, %v819, 0.0
    %vm822 = vcmask 7168
    %v823 = vsel %vm822, %v820, 0.0
    %v824 = vsel %vm822, %v821, 0.0
    %v825 = vadd.f32 %v823, %v824
    %826 = vadd.xlane.f32.xlu0 %v825
    %v827 = vpop.xlane.xlu0 %826
    %v828 = vrot.slane %v827, 4
    %v829 = vadd.f32 %v827, %v828
    %v830 = vrot.slane %v829, 2
    %v831 = vadd.f32 %v829, %v830
    %v832 = vrot.slane %v831, 1
    %v833 = vadd.f32 %v831, %v832
    %s834 = vtos %v833
    %s835 = smul.f32 %s834, 0.071428575
    %s836 = scalar_lea.smem [#allocation2], 0
    %837 = sst [smem:[%s836]] %s835
    // Predicated region
    $region42: #{forward_loss.1} parent=1 // pred_check
      _
    $region43: #{forward_loss.1} parent=1 // pred_check_branch
      %839 = sbr.rel (0) target = $region45
    $region44: #{forward_loss.1} parent=1 // pred_region
      %841 = vsyncadd [#allocation3], 0
      %s843 = sshll.u32 %s10, 4
      %s844 = int_to_ptr.hbm [resolvable:$true] %s843
      %846 = dma.smem_to_hbm [#allocation2], 16, %s844, [#allocation3]
    $region45: #{forward_loss.1} parent=1 // pred_fallthru
      _
    // Predicated region
    $region46: #{forward_loss.1} parent=1 // pred_check
      _
    $region47: #{forward_loss.1} parent=1 // pred_check_branch
      %848 = sbr.rel (0) target = $region49
    $region48: #{forward_loss.1} parent=1 // pred_region
      %850 = dma.done [#allocation3], 16
    $region49: #{forward_loss.1} parent=1 // pred_fallthru
      _
    %851 = sfence
    %852 = vsyncpa [#allocation3], 1

</llo_original>
